<compile_context>
chip_gen: v7x
topology: tpu7x:2x2x1
jax: 0.10.0
libtpu: 0.0.40
codegen_flags: <defaults>
</compile_context>

<pallas_src>
import functools

import jax
import jax.numpy as jnp
import numpy as np
from jax.experimental import pallas as pl
from jax.experimental.pallas import tpu as pltpu


def _round_up(x, m):
    return ((x + m - 1) // m) * m


def _mxu_align():
    """K/E padding multiple: 256 for 2x256^2 MXUs (v6e/v7x), 128 otherwise."""
    try:
        kind = jax.devices()[0].device_kind.lower()
    except Exception:
        return 128
    if "v6" in kind or "v7" in kind or "tpu7" in kind:
        return 256
    return 128


def _vmem_capacity_bytes():
    try:
        return int(pltpu.get_tpu_info().vmem_capacity_bytes)
    except Exception:
        return 64 * 1024 * 1024  # conservative (v7x per-core figure)


def _supports_buffered():
    try:
        pl.BlockSpec((8, 128), lambda i: (0, 0), pipeline_mode=pl.Buffered(1))
        return True
    except Exception:
        return False


_BUFFERED_OK = _supports_buffered()


def _resident_spec(block_shape, index_map):
    """Single-buffered BlockSpec for grid-invariant operands (constant
    index_map => no refetch; a second pipeline buffer would only waste VMEM)."""
    if _BUFFERED_OK:
        return pl.BlockSpec(block_shape, index_map, pipeline_mode=pl.Buffered(1))
    return pl.BlockSpec(block_shape, index_map)


# ---------------------------------------------------------------------------
# Kernels
# ---------------------------------------------------------------------------
def _encoder_kernel(x_ref, w_ref, b_ref, o_ref, *, normalize):
    # x: (TM, K) f32/bf16   w: (K, E) bf16 (resident)   b: (1, E) f32
    feats = jnp.dot(x_ref[...].astype(w_ref.dtype), w_ref[...],
                    preferred_element_type=jnp.float32) + b_ref[...]
    if normalize:
        # Padded E columns are exactly zero (zero W cols + zero bias), so the
        # sum of squares matches the unpadded reference.
        norm = jnp.sqrt(jnp.sum(feats * feats, axis=-1, keepdims=True)) + 1e-8
        feats = feats / norm
    o_ref[...] = feats.astype(o_ref.dtype)


def _encoder_kernel_ktiled(x_ref, w_ref, b_ref, o_ref, acc_ref, *, normalize):
    # Grid: (row tiles ["parallel"], K tiles ["arbitrary"]).
    k = pl.program_id(1)

    @pl.when(k == 0)
    def _():
        acc_ref[...] = jnp.zeros_like(acc_ref)

    acc_ref[...] += jnp.dot(x_ref[...].astype(w_ref.dtype), w_ref[...],
                            preferred_element_type=jnp.float32)

    @pl.when(k == pl.num_programs(1) - 1)
    def _():
        feats = acc_ref[...] + b_ref[...]
        if normalize:
            norm = jnp.sqrt(jnp.sum(feats * feats, axis=-1, keepdims=True)) + 1e-8
            feats = feats / norm
        o_ref[...] = feats.astype(o_ref.dtype)


# ---------------------------------------------------------------------------
# Wrappers
# ---------------------------------------------------------------------------
def prepare_params(weight, bias, compute_dtype=jnp.bfloat16, align=None):
    """One-time parameter prep (hoist out of the per-batch call path):
    transpose W to (img_dim, embed_size), zero-pad both dims to the MXU
    multiple (256 on v6e/v7x, 128 otherwise), cast W to bf16; bias stays f32
    (added post-matmul). Zero padding keeps the l2 norm exact."""
    if align is None:
        align = _mxu_align()
    embed_size, img_dim = weight.shape
    k_pad = _round_up(img_dim, align)
    e_pad = _round_up(embed_size, align)
    w_t = jnp.asarray(weight, jnp.float32).T                       # (K, E)
    w_t = jnp.pad(w_t, ((0, k_pad - img_dim), (0, e_pad - embed_size)))
    w_t = w_t.astype(compute_dtype)
    b = jnp.pad(jnp.asarray(bias, jnp.float32), (0, e_pad - embed_size))
    return w_t, b.reshape(1, e_pad)


def encoder_image_precomp_prepared(images, w_t_pad, b_pad, embed_size,
                                   no_imgnorm=False, out_dtype=jnp.float32,
                                   block_m=1024, k_tile=None,
                                   vmem_budget_bytes=None):
    """images: (..., img_dim); w_t_pad: (K_pad, E_pad) from prepare_params;
    b_pad: (1, E_pad) f32. Returns (..., embed_size) in out_dtype."""
    k_pad, e_pad = w_t_pad.shape
    img_dim = images.shape[-1]
    lead_shape = images.shape[:-1]
    n = int(np.prod(lead_shape)) if lead_shape else 1

    if n == 0:  # empty batch edge case
        return jnp.zeros((*lead_shape, embed_size), out_dtype)

    w_bytes = jnp.dtype(w_t_pad.dtype).itemsize
    out_bytes = jnp.dtype(out_dtype).itemsize
    needs_pad_k = (k_pad != img_dim)
    # Only cast x in the wrapper if we must pad K anyway; otherwise feed it
    # through untouched and cast in-kernel (saves an HBM pass).
    x_in_dtype = w_t_pad.dtype if needs_pad_k else images.dtype
    x_bytes = jnp.dtype(x_in_dtype).itemsize

    cap = _vmem_capacity_bytes()
    budget = int(cap * 3 // 4) if vmem_budget_bytes is None else int(vmem_budget_bytes)
    w_bufs = 1 if _BUFFERED_OK else 2

    # --- VMEM footprint models --------------------------------------------
    def need_single(tm_):
        return (2 * tm_ * k_pad * x_bytes            # x, double-buffered
                + w_bufs * k_pad * e_pad * w_bytes   # W, resident
                + e_pad * 4                          # bias
                + 2 * tm_ * e_pad * out_bytes)       # out, double-buffered

    def need_ktiled(tm_, tk_):
        return (2 * tm_ * tk_ * x_bytes
                + 2 * tk_ * e_pad * w_bytes          # W K-slices, streamed
                + e_pad * 4
                + 2 * tm_ * e_pad * out_bytes
                + tm_ * e_pad * 4)                   # f32 accumulator

    # --- Row tile: balanced tiles, >=2 when n > 8 (lets the "parallel" axis
    # split across v7x's 2 TensorCores; negligible cost on 1-TC chips). ------
    min_tiles = 2 if n > 8 else 1

    def pick_tm(fits):
        num_tiles = max(pl.cdiv(n, block_m), min_tiles)
        tm_ = _round_up(pl.cdiv(n, num_tiles), 8)
        while not fits(tm_) and tm_ > 8:
            num_tiles *= 2
            tm_ = _round_up(pl.cdiv(n, num_tiles), 8)
        return tm_

    use_ktiled = k_tile is not None
    if not use_ktiled:
        tm = pick_tm(lambda t: need_single(t) <= budget)
        use_ktiled = need_single(tm) > budget        # W too big to keep resident

    if use_ktiled:
        if k_tile is not None:
            tk = int(k_tile)
            if tk % 128 != 0 or k_pad % tk != 0:
                raise ValueError("k_tile must be a multiple of 128 dividing K_pad")
            tm = pick_tm(lambda t: need_ktiled(t, tk) <= budget)
        else:
            tk = 128
            tm = pick_tm(lambda t: need_ktiled(t, tk) <= budget)
            # Grow the K slice as far as the budget allows (fewer grid steps).
            units = k_pad // 128
            for d in range(1, units + 1):
                if units % d == 0 and need_ktiled(tm, d * 128) <= budget:
                    tk = d * 128
        vmem_needed = need_ktiled(tm, tk)
    else:
        vmem_needed = need_single(tm)

    n_pad = tm * pl.cdiv(n, tm)
    m_tiles = n_pad // tm

    # --- Stage x: cast/pad only when actually required. ---------------------
    x2d = images.reshape(n, img_dim)
    if needs_pad_k:
        x2d = x2d.astype(x_in_dtype)
    if needs_pad_k or n_pad != n:
        x2d = jnp.pad(x2d, ((0, n_pad - n), (0, k_pad - img_dim)))

    vmem_limit = int(min(cap * 9 // 10,
                         max(32 * 1024 * 1024, vmem_needed * 5 // 4)))

    normalize = not no_imgnorm

    if not use_ktiled:
        cost = pl.CostEstimate(
            flops=2 * n_pad * k_pad * e_pad,
            transcendentals=0 if no_imgnorm else n_pad,
            bytes_accessed=(n_pad * k_pad * x_bytes
                            + k_pad * e_pad * w_bytes      # W read once (resident)
                            + e_pad * 4
                            + n_pad * e_pad * out_bytes))
        out = pl.pallas_call(
            functools.partial(_encoder_kernel, normalize=normalize),
            out_shape=jax.ShapeDtypeStruct((n_pad, e_pad), out_dtype),
            grid=(m_tiles,),
            in_specs=[
                pl.BlockSpec((tm, k_pad), lambda i: (i, 0)),      # x tile
                _resident_spec((k_pad, e_pad), lambda i: (0, 0)),  # W, resident
                _resident_spec((1, e_pad), lambda i: (0, 0)),      # bias, resident
            ],
            out_specs=pl.BlockSpec((tm, e_pad), lambda i: (i, 0)),
            compiler_params=pltpu.CompilerParams(
                dimension_semantics=("parallel",),
                vmem_limit_bytes=vmem_limit),
            cost_estimate=cost,
        )(x2d, w_t_pad, b_pad)
    else:
        k_tiles = k_pad // tk
        cost = pl.CostEstimate(
            flops=2 * n_pad * k_pad * e_pad,
            transcendentals=0 if no_imgnorm else n_pad,
            bytes_accessed=(n_pad * k_pad * x_bytes
                            + m_tiles * k_pad * e_pad * w_bytes  # W restreamed / row tile
                            + e_pad * 4
                            + n_pad * e_pad * out_bytes))
        out = pl.pallas_call(
            functools.partial(_encoder_kernel_ktiled, normalize=normalize),
            out_shape=jax.ShapeDtypeStruct((n_pad, e_pad), out_dtype),
            grid=(m_tiles, k_tiles),
            in_specs=[
                pl.BlockSpec((tm, tk), lambda i, k: (i, k)),        # x K-slice
                pl.BlockSpec((tk, e_pad), lambda i, k: (k, 0)),     # W K-slice
                _resident_spec((1, e_pad), lambda i, k: (0, 0)),    # bias
            ],
            out_specs=pl.BlockSpec((tm, e_pad), lambda i, k: (i, 0)),
            scratch_shapes=[pltpu.VMEM((tm, e_pad), jnp.float32)],
            compiler_params=pltpu.CompilerParams(
                dimension_semantics=("parallel", "arbitrary"),
                vmem_limit_bytes=vmem_limit),
            cost_estimate=cost,
        )(x2d, w_t_pad, b_pad)

    out = out[:n, :embed_size]
    return out.reshape(*lead_shape, embed_size)


def encoder_image_precomp(images, weight, bias, no_imgnorm=False, **kwargs):
    """Convenience wrapper: weight (embed_size, img_dim) in PyTorch layout,
    bias (embed_size,). Prefer prepare_params + *_prepared to hoist the
    one-time transpose/pad/cast out of the per-call path."""
    embed_size = weight.shape[0]
    w_t_pad, b_pad = prepare_params(weight, bias)
    return encoder_image_precomp_prepared(images, w_t_pad, b_pad, embed_size,
                                          no_imgnorm=no_imgnorm, **kwargs)


def init_params(key, img_dim, embed_size):
    """Xavier-uniform init matching EncoderImagePrecomp.init_weights."""
    r = np.sqrt(6.0) / np.sqrt(img_dim + embed_size)
    weight = jax.random.uniform(
        key, (embed_size, img_dim), dtype=jnp.float32, minval=-r, maxval=r)
    bias = jnp.zeros((embed_size,), dtype=jnp.float32)
    return weight, bias


# TODO(synk): load_state_dict name-filtering is host-side checkpoint plumbing,
# not a kernel op; it has no Pallas equivalent and is intentionally omitted.

if __name__ == "__main__":
    batch, n_regions, img_dim, embed_size = 2, 8, 32, 32

    key = jax.random.PRNGKey(0)
    k_w, k_x = jax.random.split(key)

    weight, bias = init_params(k_w, img_dim, embed_size)
    images = jax.random.normal(k_x, (batch, n_regions, img_dim),
                               dtype=jnp.float32)

    # One-time parameter prep (transpose/pad/cast hoisted out of the call).
    w_t_pad, b_pad = prepare_params(weight, bias)
    run = jax.jit(functools.partial(encoder_image_precomp_prepared,
                                    embed_size=embed_size, no_imgnorm=False))
    out = jax.block_until_ready(run(images, w_t_pad, b_pad))

    # Pure-JAX f32 reference. Tolerance covers the bf16 MXU inputs.
    ref_feats = images @ weight.T + bias
    ref_norm = jnp.sqrt(jnp.sum(ref_feats ** 2, axis=-1, keepdims=True)) + 1e-8
    ref = ref_feats / ref_norm
    np.testing.assert_allclose(np.asarray(out), np.asarray(ref),
                               rtol=3e-2, atol=3e-2)
    assert out.shape == (batch, n_regions, embed_size)

    # no_imgnorm path.
    out_lin = jax.block_until_ready(
        encoder_image_precomp(images, weight, bias, no_imgnorm=True))
    np.testing.assert_allclose(np.asarray(out_lin), np.asarray(ref_feats),
                               rtol=3e-2, atol=3e-2)

    # Exercise the K-tiled accumulator fallback (forced) on an aligned K so it
    # actually loops over K and skips the wrapper-side pad/cast of x.
    img_dim2, embed2 = 256, 64
    k_w2, k_x2 = jax.random.split(jax.random.PRNGKey(1))
    w2, b2 = init_params(k_w2, img_dim2, embed2)
    x2 = jax.random.normal(k_x2, (3, 5, img_dim2), dtype=jnp.float32)
    w2p, b2p = prepare_params(w2, b2, align=128)
    out2 = jax.block_until_ready(
        encoder_image_precomp_prepared(x2, w2p, b2p, embed2,
                                       no_imgnorm=False, k_tile=128))
    rf2 = x2 @ w2.T + b2
    rn2 = jnp.sqrt(jnp.sum(rf2 ** 2, axis=-1, keepdims=True)) + 1e-8
    np.testing.assert_allclose(np.asarray(out2), np.asarray(rf2 / rn2),
                               rtol=3e-2, atol=3e-2)
    assert out2.shape == (3, 5, embed2)

    print("KERNEL_OK")
</pallas_src>

<mosaic_0001>
module attributes {stable_mosaic.version = 11 : i64} {
  func.func @_encoder_kernel(%arg0: i32, %arg1: memref<8x128xbf16, #tpu.memory_space<vmem>>, %arg2: memref<128x128xbf16, #tpu.memory_space<vmem>>, %arg3: memref<1x128xf32, #tpu.memory_space<vmem>>, %arg4: memref<8x128xf32, #tpu.memory_space<vmem>>) attributes {dimension_semantics = [#tpu.dimension_semantics<parallel>], iteration_bounds = array<i64: 2>, scalar_prefetch = 0 : i64, scratch_operands = 0 : i64, tpu.core_type = #tpu.core_type<tc>, window_params = [{transform_indices = @transform_0, window_bounds = array<i64: 8, 128>}, {pipeline_mode = #tpu.pipeline_mode<synchronous>, transform_indices = @transform_1, window_bounds = array<i64: 128, 128>}, {pipeline_mode = #tpu.pipeline_mode<synchronous>, transform_indices = @transform_2, window_bounds = array<i64: 1, 128>}, {transform_indices = @transform_3, window_bounds = array<i64: 8, 128>}]} {
    %c0 = arith.constant 0 : index
    %c0_0 = arith.constant 0 : index
    %0 = vector.load %arg1[%c0, %c0_0] : memref<8x128xbf16, #tpu.memory_space<vmem>>, vector<8x128xbf16>
    %c0_1 = arith.constant 0 : index
    %c0_2 = arith.constant 0 : index
    %1 = vector.load %arg2[%c0_1, %c0_2] : memref<128x128xbf16, #tpu.memory_space<vmem>>, vector<128x128xbf16>
    %cst = arith.constant dense<0.000000e+00> : vector<8x128xf32>
    %2 = tpu.matmul %0, %1, %cst {dimension_numbers = #tpu.dot_dimension_numbers<[1], [0], [0], [1], [0, 0, 1, 1], [], []>} : vector<8x128xbf16>, vector<128x128xbf16>, vector<8x128xf32> -> vector<8x128xf32>
    %c0_3 = arith.constant 0 : index
    %c0_4 = arith.constant 0 : index
    %3 = vector.load %arg3[%c0_3, %c0_4] : memref<1x128xf32, #tpu.memory_space<vmem>>, vector<1x128xf32>
    %4 = vector.broadcast %3 : vector<1x128xf32> to vector<8x128xf32>
    %5 = arith.addf %2, %4 : vector<8x128xf32>
    %6 = arith.mulf %5, %5 : vector<8x128xf32>
    %cst_5 = arith.constant dense<0.000000e+00> : vector<8xf32>
    %7 = vector.multi_reduction <add>, %6, %cst_5 [1] : vector<8x128xf32> to vector<8xf32>
    %8 = vector.shape_cast %7 : vector<8xf32> to vector<8x1xf32>
    %9 = math.sqrt %8 : vector<8x1xf32>
    %cst_6 = arith.constant 9.99999993E-9 : f32
    %10 = vector.broadcast %cst_6 : f32 to vector<8x1xf32>
    %11 = arith.addf %9, %10 : vector<8x1xf32>
    %12 = vector.broadcast %11 : vector<8x1xf32> to vector<8x128xf32>
    %13 = arith.divf %5, %12 : vector<8x128xf32>
    %c0_7 = arith.constant 0 : index
    %c0_8 = arith.constant 0 : index
    %14 = vector.load %arg4[%c0_7, %c0_8] : memref<8x128xf32, #tpu.memory_space<vmem>>, vector<8x128xf32>
    tpu.vector_store %arg4[%c0_7, %c0_8], %13 {strides = array<i32>} : memref<8x128xf32, #tpu.memory_space<vmem>>, vector<8x128xf32>,
    return
  }
  func.func @transform_0(%arg0: i32) -> (i32, i32) {
    %c0_i32 = arith.constant 0 : i32
    %c0_i32_0 = arith.constant 0 : i32
    return %arg0, %c0_i32 : i32, i32
  }
  func.func @transform_1(%arg0: i32) -> (i32, i32) {
    %c0_i32 = arith.constant 0 : i32
    %c0_i32_0 = arith.constant 0 : i32
    %c0_i32_1 = arith.constant 0 : i32
    return %c0_i32, %c0_i32_0 : i32, i32
  }
  func.func @transform_2(%arg0: i32) -> (i32, i32) {
    %c0_i32 = arith.constant 0 : i32
    %c0_i32_0 = arith.constant 0 : i32
    %c0_i32_1 = arith.constant 0 : i32
    return %c0_i32, %c0_i32_0 : i32, i32
  }
  func.func @transform_3(%arg0: i32) -> (i32, i32) {
    %c0_i32 = arith.constant 0 : i32
    %c0_i32_0 = arith.constant 0 : i32
    return %arg0, %c0_i32 : i32, i32
  }
}

</mosaic_0001>

<llo_original>
// kernel: encoder_image_precomp_prepared.1
$region0: #{encoder_image_precomp_prepared.1}
  #allocation0 [shape = 'u32[]', space=smem, size = 0x4, offset = 0x4, fixed_abs, tag = 'smem constant byte address 0x4 - core index']
  #allocation1 [shape = 'u32[144,128]{1,0:T(1,128)}', space=vmem, size = 0x12000, scoped, tag = 'internal scratch']
  %s0 = inlined_call_operand.vmem [shape: bf16[16,128], index: 0, kind: input, shape index: {}]
  %s1 = inlined_call_operand.hbm [shape: bf16[128,128], index: 1, kind: input, shape index: {}]
  %s2 = inlined_call_operand.vmem [shape: f32[1,128], index: 2, kind: input, shape index: {}]
  %s3 = inlined_call_operand.vmem [shape: f32[16,128], index: 3, kind: output, shape index: {}]
  %s4 = sld [smem:[#allocation0]]
  $region49: #{encoder_image_precomp_prepared.1} parent=0
    _
  %s6 = ssub.s32 1, %s4
  %s7 = scalar_select 0, %s6, %s4
  $region1: #{encoder_image_precomp_prepared.1} parent=0
    #allocation2 [shape = 'u8[32768]{0}', space=vmem, size = 0x8000, scoped, tag = 'input window, operand 1, single buffered']
    #allocation3 [shape = 's32[2]{0}', space=sflag, size = 0x8, scoped, tag = 'scoped memory for encoder_image_precomp_prepared.1']
    %8 = vsyncpa [#allocation3], 0
    loop: start=0, step=1, limit=4
    $region2: #{encoder_image_precomp_prepared.1} parent=1 // loop_pre_header
      _
    $region3: #{encoder_image_precomp_prepared.1} parent=1 // loop_header
      %s10 = sphi 0, %s14
      %p11 = scmp.ge.s32.totalorder %s10, 4
      %s20 = sphi 0, %s22
      %s23 = sphi 0, %s20
      %s24 = sphi 0, %s23
      %s40 = sphi 0, %s24
      %s44 = sphi 0, %s44
      %s46 = sphi 0, %s44
      %s47 = sphi 0, %s46
      %s61 = sphi 0, %s47
      %s65 = sphi 0, %s65
      %s67 = sphi 0, %s65
      %s68 = sphi 0, %s67
      %s82 = sphi 0, %s68
      %s88 = sphi 0, %s90
      %s91 = sphi 0, %s88
      %s92 = sphi 0, %s91
      %s108 = sphi 0, %s92
    $region4: #{encoder_image_precomp_prepared.1} parent=1 // loop_header_branch
      %13 = sbr.rel (%p11) target = $region8
    $region5: #{encoder_image_precomp_prepared.1} parent=1 // loop_body
      %s15 = ssub.s32 %s10, 1
      %s16 = ssub.s32 %s10, 2
      %s17 = sadd.s32 %s10, 1
      %s18 = ssub.s32 %s10, %s17
      %p19 = scmp.eq.s32.totalorder %s18, 0
      %s21 = sadd.s32 %s20, 1
      %s22 = scalar_select %p19, %s20, %s21
      %p25 = pneg %p19
      %p26 = scmp.eq.s32.totalorder %s10, 1
      %p27 = por %p25, %p26
      %p28 = scmp.ne.s32.totalorder %s20, %s23
      %p29 = scmp.eq.s32.totalorder %s10, 0
      %p30 = por %p28, %p29
      %p31 = scmp.ne.s32.totalorder %s20, %s23
      %p32 = scmp.eq.s32.totalorder %s15, 1
      %p33 = por %p31, %p32
      %p34 = scmp.ne.s32.totalorder %s23, %s24
      %p35 = scmp.eq.s32.totalorder %s15, 0
      %p36 = por %p34, %p35
      %p37 = scmp.ne.s32.totalorder %s23, %s24
      %p38 = scmp.eq.s32.totalorder %s16, 1
      %p39 = por %p37, %p38
      %p41 = scmp.ne.s32.totalorder %s24, %s40
      %p42 = scmp.eq.s32.totalorder %s16, 0
      %p43 = por %p41, %p42
      %s45 = sadd.s32 %s44, 1
      %p48 = scmp.eq.s32.totalorder %s10, 1
      %p49 = scmp.ne.s32.totalorder %s44, %s46
      %p50 = scmp.eq.s32.totalorder %s10, 0
      %p51 = por %p49, %p50
      %p52 = scmp.ne.s32.totalorder %s44, %s46
      %p53 = scmp.eq.s32.totalorder %s15, 1
      %p54 = por %p52, %p53
      %p55 = scmp.ne.s32.totalorder %s46, %s47
      %p56 = scmp.eq.s32.totalorder %s15, 0
      %p57 = por %p55, %p56
      %p58 = scmp.ne.s32.totalorder %s46, %s47
      %p59 = scmp.eq.s32.totalorder %s16, 1
      %p60 = por %p58, %p59
      %p62 = scmp.ne.s32.totalorder %s47, %s61
      %p63 = scmp.eq.s32.totalorder %s16, 0
      %p64 = por %p62, %p63
      %s66 = sadd.s32 %s65, 1
      %p69 = scmp.eq.s32.totalorder %s10, 1
      %p70 = scmp.ne.s32.totalorder %s65, %s67
      %p71 = scmp.eq.s32.totalorder %s10, 0
      %p72 = por %p70, %p71
      %p73 = scmp.ne.s32.totalorder %s65, %s67
      %p74 = scmp.eq.s32.totalorder %s15, 1
      %p75 = por %p73, %p74
      %p76 = scmp.ne.s32.totalorder %s67, %s68
      %p77 = scmp.eq.s32.totalorder %s15, 0
      %p78 = por %p76, %p77
      %p79 = scmp.ne.s32.totalorder %s67, %s68
      %p80 = scmp.eq.s32.totalorder %s16, 1
      %p81 = por %p79, %p80
      %p83 = scmp.ne.s32.totalorder %s68, %s82
      %p84 = scmp.eq.s32.totalorder %s16, 0
      %p85 = por %p83, %p84
      %s86 = ssub.s32 %s10, %s17
      %p87 = scmp.eq.s32.totalorder %s86, 0
      %s89 = sadd.s32 %s88, 1
      %s90 = scalar_select %p87, %s88, %s89
      %p93 = pneg %p87
      %p94 = scmp.eq.s32.totalorder %s10, 1
      %p95 = por %p93, %p94
      %p96 = scmp.ne.s32.totalorder %s88, %s91
      %p97 = scmp.eq.s32.totalorder %s10, 0
      %p98 = por %p96, %p97
      %p99 = scmp.ne.s32.totalorder %s88, %s91
      %p100 = scmp.eq.s32.totalorder %s15, 1
      %p101 = por %p99, %p100
      %p102 = scmp.ne.s32.totalorder %s91, %s92
      %p103 = scmp.eq.s32.totalorder %s15, 0
      %p104 = por %p102, %p103
      %p105 = scmp.ne.s32.totalorder %s91, %s92
      %p106 = scmp.eq.s32.totalorder %s16, 1
      %p107 = por %p105, %p106
      %p109 = scmp.ne.s32.totalorder %s92, %s108
      %p110 = scmp.eq.s32.totalorder %s16, 0
      %p111 = por %p109, %p110
      %p112 = scmp.le.s32.totalorder 1, %s10
      %p113 = scmp.lt.s32.totalorder %s10, 3
      %p114 = pnand %p112, %p113
      %p115 = pneg %p114
      // Predicated region
      $region9: #{encoder_image_precomp_prepared.1} parent=5 // pred_check
        _
      $region10: #{encoder_image_precomp_prepared.1} parent=5 // pred_check_branch
        %117 = sbr.rel (%p114) target = $region12
      $region11: #{encoder_image_precomp_prepared.1} parent=5 // pred_region
        %s118 = ssub.s32 %s10, 1
        // Predicated region
        $region13: #{encoder_image_precomp_prepared.1} parent=11 // pred_check
          %p119 = pneg %p57
        $region14: #{encoder_image_precomp_prepared.1} parent=11 // pred_check_branch
          %121 = sbr.rel (%p119) target = $region16
        $region15: #{encoder_image_precomp_prepared.1} parent=11 // pred_region
          %s123 = ssub.s32 1024, 1024
          %124 = vsyncadd [#allocation3], %s123
          %s125 = sshll.u32 [#allocation2], 4
          %s126 = int_to_ptr.vmem [resolvable:$true] %s125
          %131 = dma.hbm_to_vmem [thread:$0]  %s1, 1024, %s126, [#allocation3], 64, 64, 4
        $region16: #{encoder_image_precomp_prepared.1} parent=11 // pred_fallthru
          _
        // Predicated region
        $region17: #{encoder_image_precomp_prepared.1} parent=11 // pred_check
          %p132 = pneg %p78
        $region18: #{encoder_image_precomp_prepared.1} parent=11 // pred_check_branch
          %134 = sbr.rel (%p132) target = $region20
        $region19: #{encoder_image_precomp_prepared.1} parent=11 // pred_region
          _
        $region20: #{encoder_image_precomp_prepared.1} parent=11 // pred_fallthru
          _
      $region12: #{encoder_image_precomp_prepared.1} parent=5 // pred_fallthru
        _
      %p135 = scmp.lt.s32.totalorder %s10, 2
      // Predicated region
      $region21: #{encoder_image_precomp_prepared.1} parent=5 // pred_check
        %p136 = pneg %p135
      $region22: #{encoder_image_precomp_prepared.1} parent=5 // pred_check_branch
        %138 = sbr.rel (%p136) target = $region24
      $region23: #{encoder_image_precomp_prepared.1} parent=5 // pred_region
        // Predicated region
        $region25: #{encoder_image_precomp_prepared.1} parent=23 // pred_check
          %p139 = pneg %p30
        $region26: #{encoder_image_precomp_prepared.1} parent=23 // pred_check_branch
          %141 = sbr.rel (%p139) target = $region28
        $region27: #{encoder_image_precomp_prepared.1} parent=23 // pred_region
          %p142 = scmp.lt.s32.totalorder %s10, 1
          %s143 = scalar_select %p142, %s10, 1
          %s144 = smul.addr %s143, 4
          %s145 = scalar_lea.vmem %s0, %s144
        $region28: #{encoder_image_precomp_prepared.1} parent=23 // pred_fallthru
          _
      $region24: #{encoder_image_precomp_prepared.1} parent=5 // pred_fallthru
        _
      %p146 = scmp.le.s32.totalorder 1, %s10
      %p147 = scmp.lt.s32.totalorder %s10, 3
      %p148 = pnand %p146, %p147
      %p149 = pneg %p148
      // Predicated region
      $region29: #{encoder_image_precomp_prepared.1} parent=5 // pred_check
        _
      $region30: #{encoder_image_precomp_prepared.1} parent=5 // pred_check_branch
        %151 = sbr.rel (%p148) target = $region32
      $region31: #{encoder_image_precomp_prepared.1} parent=5 // pred_region
        %s152 = ssub.s32 %s10, 1
        // Predicated region
        $region33: #{encoder_image_precomp_prepared.1} parent=31 // pred_check
          %p153 = pneg %p57
        $region34: #{encoder_image_precomp_prepared.1} parent=31 // pred_check_branch
          %155 = sbr.rel (%p153) target = $region36
        $region35: #{encoder_image_precomp_prepared.1} parent=31 // pred_region
          %156 = dma.done [#allocation3], 1024
        $region36: #{encoder_image_precomp_prepared.1} parent=31 // pred_fallthru
          _
        %p157 = scmp.lt.s32.totalorder %s15, 1
        %s158 = scalar_select %p157, %s15, 1
        %s159 = smul.addr %s158, 4
        %s160 = scalar_lea.vmem %s0, %s159
        %p161 = pneg %p36
        %p162 = pneg %p33
        %p163 = pneg %p57
        %p164 = pneg %p54
        %p165 = pneg %p78
        %p166 = pneg %p75
        %p167 = pneg %p104
        %p168 = pneg %p101
        %p169 = scmp.lt.s32.totalorder %s15, 1
        %s170 = scalar_select %p169, %s15, 1
        %s171 = smul.addr %s170, 8
        %s172 = scalar_lea.vmem %s3, %s171
        %p173 = scmp.lt.s32.totalorder %s15, 1
        %s174 = scalar_select %p173, %s15, 1
        %s175 = smul.addr %s174, 4
        %s176 = scalar_lea.vmem %s0, %s175
        %p177 = scmp.lt.s32.totalorder %s15, 1
        %s178 = scalar_select %p177, %s15, 1
        %s179 = smul.addr %s178, 8
        %s180 = scalar_lea.vmem %s3, %s179
        %v182 = vld [vmem:[%s176] sm:$0xf]
        %v183 = vld [vmem:[#allocation2] sm:$0xf]
        %v184 = vld [vmem:[#allocation2 + $0x4] sm:$0xf]
        %v185 = vld [vmem:[#allocation2 + $0x8] sm:$0xf]
        %v186 = vld [vmem:[#allocation2 + $0xc] sm:$0xf]
        %v187 = vld [vmem:[#allocation2 + $0x10] sm:$0xf]
        %v188 = vld [vmem:[#allocation2 + $0x14] sm:$0xf]
        %v189 = vld [vmem:[#allocation2 + $0x18] sm:$0xf]
        %v190 = vld [vmem:[#allocation2 + $0x1c] sm:$0xf]
        %v191 = vld [vmem:[#allocation2 + $0x20] sm:$0xf]
        %v192 = vld [vmem:[#allocation2 + $0x24] sm:$0xf]
        %v193 = vld [vmem:[#allocation2 + $0x28] sm:$0xf]
        %v194 = vld [vmem:[#allocation2 + $0x2c] sm:$0xf]
        %v195 = vld [vmem:[#allocation2 + $0x30] sm:$0xf]
        %v196 = vld [vmem:[#allocation2 + $0x34] sm:$0xf]
        %v197 = vld [vmem:[#allocation2 + $0x38] sm:$0xf]
        %v198 = vld [vmem:[#allocation2 + $0x3c] sm:$0xf]
        %v199 = vld [vmem:[%s2] sm:$0x1]
        %v201 = vlaneseq
        %v202 = vshrl.u32 %v201, 7
        %v203 = vsub.s32 0, %v202
        %v204 = vrot.slane %v199, %v203
        %v222 = vunpack.c.l.b16 %v183
        %v223 = vunpack.c.l.b16 %v184
        %v224 = vunpack.c.l.b16 %v185
        %v225 = vunpack.c.l.b16 %v186
        %v226 = vunpack.c.l.b16 %v187
        %v227 = vunpack.c.l.b16 %v188
        %v228 = vunpack.c.l.b16 %v189
        %v229 = vunpack.c.l.b16 %v190
        %v230 = vunpack.c.l.b16 %v191
        %v231 = vunpack.c.l.b16 %v192
        %v232 = vunpack.c.l.b16 %v193
        %v233 = vunpack.c.l.b16 %v194
        %v234 = vunpack.c.l.b16 %v195
        %v235 = vunpack.c.l.b16 %v196
        %v236 = vunpack.c.l.b16 %v197
        %v237 = vunpack.c.l.b16 %v198
        %v238 = vpack.c.b16 %v223, %v222
        %v239 = vpack.c.b16 %v225, %v224
        %v240 = vpack.c.b16 %v227, %v226
        %v241 = vpack.c.b16 %v229, %v228
        %v242 = vpack.c.b16 %v231, %v230
        %v243 = vpack.c.b16 %v233, %v232
        %v244 = vpack.c.b16 %v235, %v234
        %v245 = vpack.c.b16 %v237, %v236
        %254 = vmatprep.subr.bf16.mxu0 0
        %255 = vmatpush1.bf16.msra.mxu0 %v238
        %256 = vmatprep.subr.bf16.mxu0 0
        %257 = vmatpush1.bf16.msra.mxu0 %v239
        %258 = vmatprep.subr.bf16.mxu0 0
        %259 = vmatpush1.bf16.msra.mxu0 %v240
        %260 = vmatprep.subr.bf16.mxu0 0
        %261 = vmatpush1.bf16.msra.mxu0 %v241
        %262 = vmatprep.subr.bf16.mxu0 0
        %263 = vmatpush1.bf16.msra.mxu0 %v242
        %264 = vmatprep.subr.bf16.mxu0 0
        %265 = vmatpush1.bf16.msra.mxu0 %v243
        %266 = vmatprep.subr.bf16.mxu0 0
        %267 = vmatpush1.bf16.msra.mxu0 %v244
        %268 = vmatprep.subr.bf16.mxu0 0
        %269 = vmatpush1.bf16.msra.mxu0 %v245
        %270 = vmatprep.subr.bf16.mxu0 0
        %271 = vmatpush1.bf16.msra.mxu0 0
        %272 = vmatprep.subr.bf16.mxu0 0
        %273 = vmatpush1.bf16.msra.mxu0 0
        %274 = vmatprep.subr.bf16.mxu0 0
        %275 = vmatpush1.bf16.msra.mxu0 0
        %276 = vmatprep.subr.bf16.mxu0 0
        %277 = vmatpush1.bf16.msra.mxu0 0
        %278 = vmatprep.subr.bf16.mxu0 0
        %279 = vmatpush1.bf16.msra.mxu0 0
        %280 = vmatprep.subr.bf16.mxu0 0
        %281 = vmatpush1.bf16.msra.mxu0 0
        %282 = vmatprep.subr.bf16.mxu0 0
        %283 = vmatpush1.bf16.msra.mxu0 0
        %284 = vmatprep.subr.bf16.mxu0 0
        %285 = vmatpush1.bf16.msra.mxu0 0
        %286 = vmatprep.mubr.bf16.mxu0 0
        %287 = vmatmul.mubr.bf16.gmra.mrb[0].mxu0 %v182
        %v288 = vpop.f32.mrb[0].mxu0
        %v289 = vadd.f32 %v204, %v288
        %v290 = vpop.f32.mrb[0].mxu0
        %v291 = vpop.f32.mrb[0].mxu0
        %v292 = vpop.f32.mrb[0].mxu0
        %293 = vdwg.mxu0
        %v294 = vmul.f32 %v289, %v289
        %295 = vadd.xlane.f32.xlu0 %v294
        %v296 = vpop.xlane.xlu0 %295
        %v297 = vrsqrt.pop %v296
        %v298 = vmul.f32 %v296, %v297
        %vm299 = vcmp.eq.f32.partialorder %v296, inf
        %v300 = vsel %vm299, %v296, %v298
        %vm301 = vcmp.eq.f32.partialorder %v296, 0.0
        %v302 = vand.u32 %v296, 2147483648
        %v303 = vsel %vm301, %v302, %v300
        %v304 = vadd.f32 %v303, 1e-08
        %v305 = vrcp.pop %v304
        %v306 = vmul.f32 %v289, %v305
        %307 = vst [vmem:[%s180] sm:$0xff] %v306
        %p308 = scmp.lt.s32.totalorder %s15, 1
        %s309 = scalar_select %p308, %s15, 1
        %s310 = smul.addr %s309, 8
        %s311 = scalar_lea.vmem %s3, %s310
        // Predicated region
        $region37: #{encoder_image_precomp_prepared.1} parent=31 // pred_check
          %p312 = pneg %p101
        $region38: #{encoder_image_precomp_prepared.1} parent=31 // pred_check_branch
          %314 = sbr.rel (%p312) target = $region40
        $region39: #{encoder_image_precomp_prepared.1} parent=31 // pred_region
          _
        $region40: #{encoder_image_precomp_prepared.1} parent=31 // pred_fallthru
          _
      $region32: #{encoder_image_precomp_prepared.1} parent=5 // pred_fallthru
        _
      %p315 = scmp.le.s32.totalorder 2, %s10
      // Predicated region
      $region41: #{encoder_image_precomp_prepared.1} parent=5 // pred_check
        %p316 = pneg %p315
      $region42: #{encoder_image_precomp_prepared.1} parent=5 // pred_check_branch
        %318 = sbr.rel (%p316) target = $region44
      $region43: #{encoder_image_precomp_prepared.1} parent=5 // pred_region
        %s319 = ssub.s32 %s10, 2
        // Predicated region
        $region45: #{encoder_image_precomp_prepared.1} parent=43 // pred_check
          %p320 = pneg %p107
        $region46: #{encoder_image_precomp_prepared.1} parent=43 // pred_check_branch
          %322 = sbr.rel (%p320) target = $region48
        $region47: #{encoder_image_precomp_prepared.1} parent=43 // pred_region
          %p323 = scmp.lt.s32.totalorder %s16, 1
          %s324 = scalar_select %p323, %s16, 1
          %s325 = smul.addr %s324, 8
          %s326 = scalar_lea.vmem %s3, %s325
        $region48: #{encoder_image_precomp_prepared.1} parent=43 // pred_fallthru
          _
      $region44: #{encoder_image_precomp_prepared.1} parent=5 // pred_fallthru
        _
    $region6: #{encoder_image_precomp_prepared.1} parent=1 // loop_footer
      %s14 = sadd.s32 1, %s10
    $region7: #{encoder_image_precomp_prepared.1} parent=1 // loop_footer_branch
      %9 = sbr.rel target = $region3
    $region8: #{encoder_image_precomp_prepared.1} parent=1 // loop_exit
      _
    %327 = vsyncpa [#allocation3], 1
    %s328 = scalar_lea.sflag [#allocation3], 1
    %329 = vsyncpa %s328, 1

</llo_original>
